<compile_context>
chip_gen: v7x
topology: tpu7x:2x2x1
jax: 0.10.0
libtpu: 0.0.40
codegen_flags: <defaults>
</compile_context>

<pallas_src>
import functools

import jax
import jax.numpy as jnp
from jax.experimental import pallas as pl
from jax.experimental.pallas import tpu as pltpu

LANE = 128
SUBLANE = 8


def _round_up(x, m):
    return (x + m - 1) // m * m


def _pad2(a, rows, cols):
    return jnp.pad(a, ((0, rows - a.shape[0]), (0, cols - a.shape[1])))


# ---------------------------------------------------------------------------
# Pallas kernel: bottom MLP -> dot interaction -> top MLP -> sigmoid
# ---------------------------------------------------------------------------
def _dlrm_kernel(x_ref, emb_ref,
                 wb1_ref, bb1_ref, wb2_ref, bb2_ref,
                 wt1_ref, bt1_ref, wt2_ref, bt2_ref,
                 out_ref,
                 *, num_tables, d_pad, interact_itself):
    cdt = wb1_ref.dtype                     # compute dtype (f32 or bf16)
    x = x_ref[...]                          # (bt, F_pad)

    # ---- bottom MLP (sigmoid_bot = -1 => ReLU after every linear) ----
    h = jnp.dot(x, wb1_ref[...], preferred_element_type=jnp.float32) + bb1_ref[...]
    h = jnp.maximum(h, 0.0).astype(cdt)
    xb = jnp.dot(h, wb2_ref[...], preferred_element_type=jnp.float32) + bb2_ref[...]
    xb = jnp.maximum(xb, 0.0).astype(cdt)   # (bt, d_pad)

    # ---- interact_features ('dot', strict lower triangle) ----
    # Pairwise elementwise products (VPU, fully lane-parallel).  The per-pair
    # d-reduction and the triangular selection are folded into the expanded
    # top weight wt1 (built in the wrapper), so [xb | products] feeds a single
    # lane-dense MXU matmul -- no XLU reductions, no (B, 1) concats.
    emb = emb_ref[...]                      # (bt, num_tables * d_pad)
    vecs = [xb] + [emb[:, t * d_pad:(t + 1) * d_pad] for t in range(num_tables)]
    offset = 1 if interact_itself else 0
    feats = [xb]
    for i in range(len(vecs)):
        for j in range(i + offset):
            feats.append(vecs[i] * vecs[j])
    r = jnp.concatenate(feats, axis=1)      # (bt, (1 + npairs) * d_pad)

    # ---- top MLP (ReLU, then last layer Linear + Sigmoid) ----
    h2 = jnp.dot(r, wt1_ref[...], preferred_element_type=jnp.float32) + bt1_ref[...]
    h2 = jnp.maximum(h2, 0.0).astype(cdt)
    logits = jnp.dot(h2, wt2_ref[...], preferred_element_type=jnp.float32) + bt2_ref[...]

    # loss_threshold == 0.0 -> clamp(p, 0, 1) after sigmoid is a no-op; dropped.
    out_ref[...] = jax.nn.sigmoid(logits)


# ---------------------------------------------------------------------------
# Wrapper: pad / transpose / expand weights once, launch batch-tiled pallas_call
# ---------------------------------------------------------------------------
def _prepare_params(params, *, dense_dim, emb_dim, num_tables,
                    interact_itself, compute_dtype):
    n = num_tables + 1
    offset = 1 if interact_itself else 0
    npairs = sum(i + offset for i in range(n))

    f_pad = _round_up(dense_dim, LANE)
    d_pad = _round_up(emb_dim, LANE)
    h1 = params["wb1"].shape[0]
    h2 = params["wt1"].shape[0]
    out_dim = params["wt2"].shape[0]
    h1_pad = _round_up(h1, LANE)
    h2_pad = _round_up(h2, LANE)
    out_pad = _round_up(out_dim, LANE)

    # PyTorch stores Linear weights as (out, in); pre-transpose to (in, out).
    wb1 = _pad2(params["wb1"].T, f_pad, h1_pad).astype(compute_dtype)
    bb1 = _pad2(params["bb1"].reshape(1, -1), 1, h1_pad).astype(jnp.float32)
    wb2 = _pad2(params["wb2"].T, h1_pad, d_pad).astype(compute_dtype)
    bb2 = _pad2(params["bb2"].reshape(1, -1), 1, d_pad).astype(jnp.float32)

    wt1_t = params["wt1"].T                          # (d + npairs, h2)
    wt1x = _pad2(wt1_t[:emb_dim], d_pad, h2_pad)     # dense-x part
    wz = wt1_t[emb_dim:]                             # (npairs, h2), pair order (i, j<i+offset)
    # Expand: wt1z[(p*d_pad + k), h] = wz[p, h].  Pairwise-product lanes beyond
    # emb_dim are zero, so the repeated weights there contribute nothing.
    wt1z = _pad2(jnp.repeat(wz, d_pad, axis=0), npairs * d_pad, h2_pad)
    # Single combined top-MLP-1 weight: [xb | products] @ wt1 in one MXU matmul.
    wt1 = jnp.concatenate([wt1x, wt1z], axis=0).astype(compute_dtype)
    bt1 = _pad2(params["bt1"].reshape(1, -1), 1, h2_pad).astype(jnp.float32)

    wt2 = _pad2(params["wt2"].T, h2_pad, out_pad).astype(compute_dtype)
    bt2 = _pad2(params["bt2"].reshape(1, -1), 1, out_pad).astype(jnp.float32)

    dims = dict(f_pad=f_pad, d_pad=d_pad, h1_pad=h1_pad, h2_pad=h2_pad,
                out_pad=out_pad, out_dim=out_dim, npairs=npairs)
    weights = (wb1, bb1, wb2, bb2, wt1, bt1, wt2, bt2)
    return weights, dims


def dlrm_forward(dense_x, emb_list, params, *, interact_itself=False,
                 block_b=256, compute_dtype=jnp.float32):
    """Fused DLRM forward.  emb_list: list of (B, d) embedding-bag outputs."""
    B, dense_dim = dense_x.shape
    num_tables = len(emb_list)
    emb_dim = emb_list[0].shape[1]

    weights, dims = _prepare_params(
        params, dense_dim=dense_dim, emb_dim=emb_dim, num_tables=num_tables,
        interact_itself=interact_itself, compute_dtype=compute_dtype)
    f_pad, d_pad, out_pad = dims["f_pad"], dims["d_pad"], dims["out_pad"]

    # Batch tile: multiple of 8 sublanes; on v7x (64 MiB VMEM) keep block_b
    # around 1024-2048, on v5e/v6e (128 MiB) 4096+ is fine.  Toy sizes collapse
    # to a single tile.
    bt = _round_up(min(block_b, B), SUBLANE)
    b_pad = _round_up(B, bt)

    x_p = jnp.zeros((b_pad, f_pad), compute_dtype)
    x_p = x_p.at[:B, :dense_dim].set(dense_x.astype(compute_dtype))
    emb_p = jnp.zeros((b_pad, num_tables * d_pad), compute_dtype)
    for t, e in enumerate(emb_list):
        emb_p = emb_p.at[:B, t * d_pad:t * d_pad + emb_dim].set(e.astype(compute_dtype))

    grid = (b_pad // bt,)

    def data_spec(width):
        return pl.BlockSpec((bt, width), lambda b: (b, 0))

    def resident(a):                      # constant index_map: stays in VMEM
        return pl.BlockSpec(a.shape, lambda b: (0, 0))

    kernel = functools.partial(_dlrm_kernel, num_tables=num_tables,
                               d_pad=d_pad, interact_itself=interact_itself)

    out = pl.pallas_call(
        kernel,
        out_shape=jax.ShapeDtypeStruct((b_pad, out_pad), jnp.float32),
        grid=grid,
        in_specs=[data_spec(f_pad), data_spec(num_tables * d_pad)]
                 + [resident(w) for w in weights],
        out_specs=data_spec(out_pad),
        compiler_params=pltpu.CompilerParams(
            dimension_semantics=("parallel",),
            vmem_limit_bytes=64 * 1024 * 1024),
    )(x_p, emb_p, *weights)

    return out[:B, :dims["out_dim"]]


# ---------------------------------------------------------------------------
# Glue: EmbeddingBag(sum) lookup with (offsets, indices), plain JAX
# ---------------------------------------------------------------------------
def embedding_bag_sum(table, offsets, indices, batch_size):
    pos = jnp.arange(indices.shape[0])
    bag_ids = jnp.searchsorted(offsets, pos, side="right") - 1
    rows = table[indices]
    return jax.ops.segment_sum(rows, bag_ids, num_segments=batch_size)


# ---------------------------------------------------------------------------
# Pure-JAX reference for verification
# ---------------------------------------------------------------------------
def dlrm_reference(dense_x, emb_list, params):
    h = jnp.maximum(dense_x @ params["wb1"].T + params["bb1"], 0.0)
    xb = jnp.maximum(h @ params["wb2"].T + params["bb2"], 0.0)
    B, d = xb.shape
    T = jnp.concatenate([xb] + emb_list, axis=1).reshape(B, -1, d)
    Z = jnp.einsum("bnd,bmd->bnm", T, T)
    n = T.shape[1]
    li = [i for i in range(n) for j in range(i)]
    lj = [j for i in range(n) for j in range(i)]
    zflat = Z[:, jnp.array(li), jnp.array(lj)]
    r = jnp.concatenate([xb, zflat], axis=1)
    h2 = jnp.maximum(r @ params["wt1"].T + params["bt1"], 0.0)
    p = jax.nn.sigmoid(h2 @ params["wt2"].T + params["bt2"])
    return jnp.clip(p, 0.0, 1.0)


# ---------------------------------------------------------------------------
if __name__ == "__main__":
    B = 8                 # batch
    F_DENSE = 16          # dense feature dim
    EMB_DIM = 16          # d
    NUM_TABLES = 3        # number of sparse embedding tables
    ROWS = 10             # rows per embedding table
    BAG = 4               # lookups per sample per table
    LN_BOT = [F_DENSE, 32, EMB_DIM]                    # sigmoid_bot = -1
    N_INT = (1 + NUM_TABLES) * NUM_TABLES // 2         # strict lower triangle
    LN_TOP = [EMB_DIM + N_INT, 32, 1]                  # sigmoid_top = last layer

    key = jax.random.PRNGKey(0)
    ks = jax.random.split(key, 16)

    params = {
        "wb1": jax.random.normal(ks[0], (LN_BOT[1], LN_BOT[0]), jnp.float32) * 0.05,
        "bb1": jax.random.normal(ks[1], (1, LN_BOT[1]), jnp.float32) * 0.01,
        "wb2": jax.random.normal(ks[2], (LN_BOT[2], LN_BOT[1]), jnp.float32) * 0.05,
        "bb2": jax.random.normal(ks[3], (1, LN_BOT[2]), jnp.float32) * 0.01,
        "wt1": jax.random.normal(ks[4], (LN_TOP[1], LN_TOP[0]), jnp.float32) * 0.05,
        "bt1": jax.random.normal(ks[5], (1, LN_TOP[1]), jnp.float32) * 0.01,
        "wt2": jax.random.normal(ks[6], (LN_TOP[2], LN_TOP[1]), jnp.float32) * 0.05,
        "bt2": jax.random.normal(ks[7], (1, LN_TOP[2]), jnp.float32) * 0.01,
    }
    tables = [jax.random.normal(ks[8 + t], (ROWS, EMB_DIM), jnp.float32) * 0.1
              for t in range(NUM_TABLES)]

    dense_x = jax.random.normal(ks[12], (B, F_DENSE), jnp.float32)
    offsets = jnp.arange(B, dtype=jnp.int32) * BAG
    indices = jax.random.randint(ks[13], (B * BAG,), 0, ROWS, dtype=jnp.int32)

    # Embedding lookups (the RPC "emb_rref.forward(offsets, indices)" part)
    emb_list = [embedding_bag_sum(tbl, offsets, indices, B) for tbl in tables]

    ref = dlrm_reference(dense_x, emb_list, params)

    # f32 path
    out = dlrm_forward(dense_x, emb_list, params)
    out = jax.block_until_ready(out)
    assert out.shape == (B, 1)
    assert jnp.allclose(out, ref, atol=1e-3, rtol=1e-3), "f32 mismatch vs reference"

    # bf16 compute path (f32 MXU accumulation) — production option for v6e/v7x
    out_bf16 = dlrm_forward(dense_x, emb_list, params, compute_dtype=jnp.bfloat16)
    out_bf16 = jax.block_until_ready(out_bf16)
    assert out_bf16.shape == (B, 1)
    assert jnp.max(jnp.abs(out_bf16 - ref)) < 5e-2, "bf16 mismatch vs reference"

    print("KERNEL_OK")
</pallas_src>

<mosaic_0001>
module attributes {stable_mosaic.version = 11 : i64} {
  func.func @_dlrm_kernel(%arg0: i32, %arg1: memref<8x128xf32, #tpu.memory_space<vmem>>, %arg2: memref<8x384xf32, #tpu.memory_space<vmem>>, %arg3: memref<128x128xf32, #tpu.memory_space<vmem>>, %arg4: memref<1x128xf32, #tpu.memory_space<vmem>>, %arg5: memref<128x128xf32, #tpu.memory_space<vmem>>, %arg6: memref<1x128xf32, #tpu.memory_space<vmem>>, %arg7: memref<896x128xf32, #tpu.memory_space<vmem>>, %arg8: memref<1x128xf32, #tpu.memory_space<vmem>>, %arg9: memref<128x128xf32, #tpu.memory_space<vmem>>, %arg10: memref<1x128xf32, #tpu.memory_space<vmem>>, %arg11: memref<8x128xf32, #tpu.memory_space<vmem>>) attributes {dimension_semantics = [#tpu.dimension_semantics<parallel>], iteration_bounds = array<i64: 1>, scalar_prefetch = 0 : i64, scratch_operands = 0 : i64, tpu.core_type = #tpu.core_type<tc>, window_params = [{transform_indices = @transform_0, window_bounds = array<i64: 8, 128>}, {transform_indices = @transform_1, window_bounds = array<i64: 8, 384>}, {pipeline_mode = #tpu.pipeline_mode<synchronous>, transform_indices = @transform_2, window_bounds = array<i64: 128, 128>}, {pipeline_mode = #tpu.pipeline_mode<synchronous>, transform_indices = @transform_3, window_bounds = array<i64: 1, 128>}, {pipeline_mode = #tpu.pipeline_mode<synchronous>, transform_indices = @transform_4, window_bounds = array<i64: 128, 128>}, {pipeline_mode = #tpu.pipeline_mode<synchronous>, transform_indices = @transform_5, window_bounds = array<i64: 1, 128>}, {pipeline_mode = #tpu.pipeline_mode<synchronous>, transform_indices = @transform_6, window_bounds = array<i64: 896, 128>}, {pipeline_mode = #tpu.pipeline_mode<synchronous>, transform_indices = @transform_7, window_bounds = array<i64: 1, 128>}, {pipeline_mode = #tpu.pipeline_mode<synchronous>, transform_indices = @transform_8, window_bounds = array<i64: 128, 128>}, {pipeline_mode = #tpu.pipeline_mode<synchronous>, transform_indices = @transform_9, window_bounds = array<i64: 1, 128>}, {transform_indices = @transform_10, window_bounds = array<i64: 8, 128>}]} {
    %c0 = arith.constant 0 : index
    %c0_0 = arith.constant 0 : index
    %0 = vector.load %arg1[%c0, %c0_0] : memref<8x128xf32, #tpu.memory_space<vmem>>, vector<8x128xf32>
    %c0_1 = arith.constant 0 : index
    %c0_2 = arith.constant 0 : index
    %1 = vector.load %arg3[%c0_1, %c0_2] : memref<128x128xf32, #tpu.memory_space<vmem>>, vector<128x128xf32>
    %cst = arith.constant dense<0.000000e+00> : vector<8x128xf32>
    %2 = tpu.matmul %0, %1, %cst {dimension_numbers = #tpu.dot_dimension_numbers<[1], [0], [0], [1], [0, 0, 1, 1], [], []>} : vector<8x128xf32>, vector<128x128xf32>, vector<8x128xf32> -> vector<8x128xf32>
    %c0_3 = arith.constant 0 : index
    %c0_4 = arith.constant 0 : index
    %3 = vector.load %arg4[%c0_3, %c0_4] : memref<1x128xf32, #tpu.memory_space<vmem>>, vector<1x128xf32>
    %4 = vector.broadcast %3 : vector<1x128xf32> to vector<8x128xf32>
    %5 = arith.addf %2, %4 : vector<8x128xf32>
    %cst_5 = arith.constant 0.000000e+00 : f32
    %6 = vector.broadcast %cst_5 : f32 to vector<8x128xf32>
    %7 = arith.maximumf %5, %6 : vector<8x128xf32>
    %c0_6 = arith.constant 0 : index
    %c0_7 = arith.constant 0 : index
    %8 = vector.load %arg5[%c0_6, %c0_7] : memref<128x128xf32, #tpu.memory_space<vmem>>, vector<128x128xf32>
    %cst_8 = arith.constant dense<0.000000e+00> : vector<8x128xf32>
    %9 = tpu.matmul %7, %8, %cst_8 {dimension_numbers = #tpu.dot_dimension_numbers<[1], [0], [0], [1], [0, 0, 1, 1], [], []>} : vector<8x128xf32>, vector<128x128xf32>, vector<8x128xf32> -> vector<8x128xf32>
    %c0_9 = arith.constant 0 : index
    %c0_10 = arith.constant 0 : index
    %10 = vector.load %arg6[%c0_9, %c0_10] : memref<1x128xf32, #tpu.memory_space<vmem>>, vector<1x128xf32>
    %11 = vector.broadcast %10 : vector<1x128xf32> to vector<8x128xf32>
    %12 = arith.addf %9, %11 : vector<8x128xf32>
    %cst_11 = arith.constant 0.000000e+00 : f32
    %13 = vector.broadcast %cst_11 : f32 to vector<8x128xf32>
    %14 = arith.maximumf %12, %13 : vector<8x128xf32>
    %c0_12 = arith.constant 0 : index
    %c0_13 = arith.constant 0 : index
    %15 = vector.load %arg2[%c0_12, %c0_13] : memref<8x384xf32, #tpu.memory_space<vmem>>, vector<8x384xf32>
    %16 = vector.extract_strided_slice %15 {offsets = [0, 0], sizes = [8, 128], strides = [1, 1]} : vector<8x384xf32> to vector<8x128xf32>
    %17 = vector.extract_strided_slice %15 {offsets = [0, 128], sizes = [8, 128], strides = [1, 1]} : vector<8x384xf32> to vector<8x128xf32>
    %18 = vector.extract_strided_slice %15 {offsets = [0, 256], sizes = [8, 128], strides = [1, 1]} : vector<8x384xf32> to vector<8x128xf32>
    %19 = arith.mulf %16, %14 : vector<8x128xf32>
    %20 = arith.mulf %17, %14 : vector<8x128xf32>
    %21 = arith.mulf %17, %16 : vector<8x128xf32>
    %22 = arith.mulf %18, %14 : vector<8x128xf32>
    %23 = arith.mulf %18, %16 : vector<8x128xf32>
    %24 = arith.mulf %18, %17 : vector<8x128xf32>
    %25 = tpu.concatenate %14, %19, %20, %21, %22, %23, %24 in 1 : vector<8x128xf32>, vector<8x128xf32>, vector<8x128xf32>, vector<8x128xf32>, vector<8x128xf32>, vector<8x128xf32>, vector<8x128xf32> -> vector<8x896xf32>
    %c0_14 = arith.constant 0 : index
    %c0_15 = arith.constant 0 : index
    %26 = vector.load %arg7[%c0_14, %c0_15] : memref<896x128xf32, #tpu.memory_space<vmem>>, vector<896x128xf32>
    %cst_16 = arith.constant dense<0.000000e+00> : vector<8x128xf32>
    %27 = tpu.matmul %25, %26, %cst_16 {dimension_numbers = #tpu.dot_dimension_numbers<[1], [0], [0], [1], [0, 0, 1, 1], [], []>} : vector<8x896xf32>, vector<896x128xf32>, vector<8x128xf32> -> vector<8x128xf32>
    %c0_17 = arith.constant 0 : index
    %c0_18 = arith.constant 0 : index
    %28 = vector.load %arg8[%c0_17, %c0_18] : memref<1x128xf32, #tpu.memory_space<vmem>>, vector<1x128xf32>
    %29 = vector.broadcast %28 : vector<1x128xf32> to vector<8x128xf32>
    %30 = arith.addf %27, %29 : vector<8x128xf32>
    %cst_19 = arith.constant 0.000000e+00 : f32
    %31 = vector.broadcast %cst_19 : f32 to vector<8x128xf32>
    %32 = arith.maximumf %30, %31 : vector<8x128xf32>
    %c0_20 = arith.constant 0 : index
    %c0_21 = arith.constant 0 : index
    %33 = vector.load %arg9[%c0_20, %c0_21] : memref<128x128xf32, #tpu.memory_space<vmem>>, vector<128x128xf32>
    %cst_22 = arith.constant dense<0.000000e+00> : vector<8x128xf32>
    %34 = tpu.matmul %32, %33, %cst_22 {dimension_numbers = #tpu.dot_dimension_numbers<[1], [0], [0], [1], [0, 0, 1, 1], [], []>} : vector<8x128xf32>, vector<128x128xf32>, vector<8x128xf32> -> vector<8x128xf32>
    %c0_23 = arith.constant 0 : index
    %c0_24 = arith.constant 0 : index
    %35 = vector.load %arg10[%c0_23, %c0_24] : memref<1x128xf32, #tpu.memory_space<vmem>>, vector<1x128xf32>
    %36 = vector.broadcast %35 : vector<1x128xf32> to vector<8x128xf32>
    %37 = arith.addf %34, %36 : vector<8x128xf32>
    %38 = arith.negf %37 : vector<8x128xf32>
    %39 = math.exp %38 : vector<8x128xf32>
    %cst_25 = arith.constant 1.000000e+00 : f32
    %40 = vector.broadcast %cst_25 : f32 to vector<8x128xf32>
    %41 = arith.addf %40, %39 : vector<8x128xf32>
    %42 = arith.divf %40, %41 : vector<8x128xf32>
    %c0_26 = arith.constant 0 : index
    %c0_27 = arith.constant 0 : index
    %43 = vector.load %arg11[%c0_26, %c0_27] : memref<8x128xf32, #tpu.memory_space<vmem>>, vector<8x128xf32>
    tpu.vector_store %arg11[%c0_26, %c0_27], %42 {strides = array<i32>} : memref<8x128xf32, #tpu.memory_space<vmem>>, vector<8x128xf32>,
    return
  }
  func.func @transform_0(%arg0: i32) -> (i32, i32) {
    %c0_i32 = arith.constant 0 : i32
    %c0_i32_0 = arith.constant 0 : i32
    return %arg0, %c0_i32 : i32, i32
  }
  func.func @transform_1(%arg0: i32) -> (i32, i32) {
    %c0_i32 = arith.constant 0 : i32
    %c0_i32_0 = arith.constant 0 : i32
    return %arg0, %c0_i32 : i32, i32
  }
  func.func @transform_2(%arg0: i32) -> (i32, i32) {
    %c0_i32 = arith.constant 0 : i32
    %c0_i32_0 = arith.constant 0 : i32
    %c0_i32_1 = arith.constant 0 : i32
    return %c0_i32, %c0_i32_0 : i32, i32
  }
  func.func @transform_3(%arg0: i32) -> (i32, i32) {
    %c0_i32 = arith.constant 0 : i32
    %c0_i32_0 = arith.constant 0 : i32
    %c0_i32_1 = arith.constant 0 : i32
    return %c0_i32, %c0_i32_0 : i32, i32
  }
  func.func @transform_4(%arg0: i32) -> (i32, i32) {
    %c0_i32 = arith.constant 0 : i32
    %c0_i32_0 = arith.constant 0 : i32
    %c0_i32_1 = arith.constant 0 : i32
    return %c0_i32, %c0_i32_0 : i32, i32
  }
  func.func @transform_5(%arg0: i32) -> (i32, i32) {
    %c0_i32 = arith.constant 0 : i32
    %c0_i32_0 = arith.constant 0 : i32
    %c0_i32_1 = arith.constant 0 : i32
    return %c0_i32, %c0_i32_0 : i32, i32
  }
  func.func @transform_6(%arg0: i32) -> (i32, i32) {
    %c0_i32 = arith.constant 0 : i32
    %c0_i32_0 = arith.constant 0 : i32
    %c0_i32_1 = arith.constant 0 : i32
    return %c0_i32, %c0_i32_0 : i32, i32
  }
  func.func @transform_7(%arg0: i32) -> (i32, i32) {
    %c0_i32 = arith.constant 0 : i32
    %c0_i32_0 = arith.constant 0 : i32
    %c0_i32_1 = arith.constant 0 : i32
    return %c0_i32, %c0_i32_0 : i32, i32
  }
  func.func @transform_8(%arg0: i32) -> (i32, i32) {
    %c0_i32 = arith.constant 0 : i32
    %c0_i32_0 = arith.constant 0 : i32
    %c0_i32_1 = arith.constant 0 : i32
    return %c0_i32, %c0_i32_0 : i32, i32
  }
  func.func @transform_9(%arg0: i32) -> (i32, i32) {
    %c0_i32 = arith.constant 0 : i32
    %c0_i32_0 = arith.constant 0 : i32
    %c0_i32_1 = arith.constant 0 : i32
    return %c0_i32, %c0_i32_0 : i32, i32
  }
  func.func @transform_10(%arg0: i32) -> (i32, i32) {
    %c0_i32 = arith.constant 0 : i32
    %c0_i32_0 = arith.constant 0 : i32
    return %arg0, %c0_i32 : i32, i32
  }
}

</mosaic_0001>

<llo_original>
// kernel: tpu_custom_call.1
$region0: #{tpu_custom_call.1}
  #allocation0 [shape = 'u32[]', space=smem, size = 0x4, offset = 0x4, fixed_abs, tag = 'smem constant byte address 0x4 - core index']
  #allocation1 [shape = 'u32[144,128]{1,0:T(1,128)}', space=vmem, size = 0x12000, scoped, tag = 'internal scratch']
  %s0 = inlined_call_operand.hbm [shape: f32[8,128], index: 0, kind: input, shape index: {}]
  %s1 = inlined_call_operand.hbm [shape: f32[8,384], index: 1, kind: input, shape index: {}]
  %s2 = inlined_call_operand.hbm [shape: f32[128,128], index: 2, kind: input, shape index: {}]
  %s3 = inlined_call_operand.hbm [shape: f32[1,128], index: 3, kind: input, shape index: {}]
  %s4 = inlined_call_operand.hbm [shape: f32[128,128], index: 4, kind: input, shape index: {}]
  %s5 = inlined_call_operand.hbm [shape: f32[1,128], index: 5, kind: input, shape index: {}]
  %s6 = inlined_call_operand.hbm [shape: f32[896,128], index: 6, kind: input, shape index: {}]
  %s7 = inlined_call_operand.hbm [shape: f32[1,128], index: 7, kind: input, shape index: {}]
  %s8 = inlined_call_operand.hbm [shape: f32[128,128], index: 8, kind: input, shape index: {}]
  %s9 = inlined_call_operand.hbm [shape: f32[1,128], index: 9, kind: input, shape index: {}]
  %s10 = inlined_call_operand.hbm [shape: f32[8,128], index: 10, kind: output, shape index: {}]
  %s11 = sld [smem:[#allocation0]]
  $region90: #{tpu_custom_call.1} parent=0
    _
  %s13 = ssub.s32 1, %s11
  %s14 = scalar_select 0, %s13, %s11
  $region1: #{tpu_custom_call.1} parent=0
    #allocation2 [shape = 'u8[4096]{0}', space=vmem, size = 0x1000, scoped, tag = 'input window, operand 0, single buffered']
    #allocation3 [shape = 's32[1]{0}', space=sflag, size = 0x4, scoped, tag = 'scoped memory for tpu_custom_call.1']
    #allocation4 [shape = 's32[1]{0}', space=sflag, size = 0x4, scoped, tag = 'scoped memory for tpu_custom_call.1']
    #allocation5 [shape = 'u8[12288]{0}', space=vmem, size = 0x3000, scoped, tag = 'input window, operand 1, single buffered']
    #allocation6 [shape = 's32[1]{0}', space=sflag, size = 0x4, scoped, tag = 'scoped memory for tpu_custom_call.1']
    #allocation7 [shape = 'u8[65536]{0}', space=vmem, size = 0x10000, scoped, tag = 'input window, operand 2, single buffered']
    #allocation8 [shape = 'u8[512]{0}', space=vmem, size = 0x400, scoped, tag = 'input window, operand 3, single buffered']
    #allocation9 [shape = 's32[1]{0}', space=sflag, size = 0x4, scoped, tag = 'scoped memory for tpu_custom_call.1']
    #allocation10 [shape = 'u8[65536]{0}', space=vmem, size = 0x10000, scoped, tag = 'input window, operand 4, single buffered']
    #allocation11 [shape = 'u8[512]{0}', space=vmem, size = 0x400, scoped, tag = 'input window, operand 5, single buffered']
    #allocation12 [shape = 's32[1]{0}', space=sflag, size = 0x4, scoped, tag = 'scoped memory for tpu_custom_call.1']
    #allocation13 [shape = 'u8[458752]{0}', space=vmem, size = 0x70000, scoped, tag = 'input window, operand 6, single buffered']
    #allocation14 [shape = 'u8[512]{0}', space=vmem, size = 0x400, scoped, tag = 'input window, operand 7, single buffered']
    #allocation15 [shape = 's32[1]{0}', space=sflag, size = 0x4, scoped, tag = 'scoped memory for tpu_custom_call.1']
    #allocation16 [shape = 'u8[65536]{0}', space=vmem, size = 0x10000, scoped, tag = 'input window, operand 8, single buffered']
    #allocation17 [shape = 'u8[512]{0}', space=vmem, size = 0x400, scoped, tag = 'input window, operand 9, single buffered']
    #allocation18 [shape = 's32[1]{0}', space=sflag, size = 0x4, scoped, tag = 'scoped memory for tpu_custom_call.1']
    #allocation19 [shape = 'u8[4096]{0}', space=vmem, size = 0x1000, scoped, tag = 'output window, operand 0, single buffered']
    %15 = vsyncpa [#allocation3], 0
    %16 = vsyncpa [#allocation6], 0
    %17 = vsyncpa [#allocation9], 0
    %18 = vsyncpa [#allocation12], 0
    %19 = vsyncpa [#allocation15], 0
    %20 = vsyncpa [#allocation18], 0
    %21 = vsyncpa [#allocation4], 0
    // Predicated region
    $region2: #{tpu_custom_call.1} parent=1 // pred_check
      _
    $region3: #{tpu_custom_call.1} parent=1 // pred_check_branch
      %23 = sbr.rel (0) target = $region5
    $region4: #{tpu_custom_call.1} parent=1 // pred_region
      %s25 = ssub.s32 128, 128
      %26 = vsyncadd [#allocation3], %s25
      %s28 = sshll.u32 [#allocation2], 4
      %s29 = int_to_ptr.vmem [resolvable:$true] %s28
      %31 = dma.hbm_to_vmem [thread:$0]  %s0, 128, %s29, [#allocation3]
    $region5: #{tpu_custom_call.1} parent=1 // pred_fallthru
      _
    // Predicated region
    $region6: #{tpu_custom_call.1} parent=1 // pred_check
      _
    $region7: #{tpu_custom_call.1} parent=1 // pred_check_branch
      %33 = sbr.rel (0) target = $region9
    $region8: #{tpu_custom_call.1} parent=1 // pred_region
      %s35 = ssub.s32 384, 384
      %36 = vsyncadd [#allocation6], %s35
      %s38 = sshll.u32 [#allocation5], 4
      %s39 = int_to_ptr.vmem [resolvable:$true] %s38
      %41 = dma.hbm_to_vmem [thread:$0]  %s1, 384, %s39, [#allocation6]
    $region9: #{tpu_custom_call.1} parent=1 // pred_fallthru
      _
    // Predicated region
    $region10: #{tpu_custom_call.1} parent=1 // pred_check
      _
    $region11: #{tpu_custom_call.1} parent=1 // pred_check_branch
      %43 = sbr.rel (0) target = $region13
    $region12: #{tpu_custom_call.1} parent=1 // pred_region
      %s45 = ssub.s32 2048, 2048
      %46 = vsyncadd [#allocation6], %s45
      %s47 = sshll.u32 [#allocation7], 4
      %s48 = int_to_ptr.vmem [resolvable:$true] %s47
      %53 = dma.hbm_to_vmem [thread:$0]  %s2, 2048, %s48, [#allocation6], 128, 128, 8
    $region13: #{tpu_custom_call.1} parent=1 // pred_fallthru
      _
    // Predicated region
    $region14: #{tpu_custom_call.1} parent=1 // pred_check
      _
    $region15: #{tpu_custom_call.1} parent=1 // pred_check_branch
      %55 = sbr.rel (0) target = $region17
    $region16: #{tpu_custom_call.1} parent=1 // pred_region
      %s57 = ssub.s32 16, 16
      %58 = vsyncadd [#allocation9], %s57
      %s60 = sshll.u32 [#allocation8], 4
      %s61 = int_to_ptr.vmem [resolvable:$true] %s60
      %63 = dma.hbm_to_vmem [thread:$0]  %s3, 16, %s61, [#allocation9]
    $region17: #{tpu_custom_call.1} parent=1 // pred_fallthru
      _
    // Predicated region
    $region18: #{tpu_custom_call.1} parent=1 // pred_check
      _
    $region19: #{tpu_custom_call.1} parent=1 // pred_check_branch
      %65 = sbr.rel (0) target = $region21
    $region20: #{tpu_custom_call.1} parent=1 // pred_region
      %s67 = ssub.s32 2048, 2048
      %68 = vsyncadd [#allocation9], %s67
      %s69 = sshll.u32 [#allocation10], 4
      %s70 = int_to_ptr.vmem [resolvable:$true] %s69
      %75 = dma.hbm_to_vmem [thread:$0]  %s4, 2048, %s70, [#allocation9], 128, 128, 8
    $region21: #{tpu_custom_call.1} parent=1 // pred_fallthru
      _
    // Predicated region
    $region22: #{tpu_custom_call.1} parent=1 // pred_check
      _
    $region23: #{tpu_custom_call.1} parent=1 // pred_check_branch
      %77 = sbr.rel (0) target = $region25
    $region24: #{tpu_custom_call.1} parent=1 // pred_region
      %s79 = ssub.s32 16, 16
      %80 = vsyncadd [#allocation12], %s79
      %s82 = sshll.u32 [#allocation11], 4
      %s83 = int_to_ptr.vmem [resolvable:$true] %s82
      %85 = dma.hbm_to_vmem [thread:$0]  %s5, 16, %s83, [#allocation12]
    $region25: #{tpu_custom_call.1} parent=1 // pred_fallthru
      _
    // Predicated region
    $region26: #{tpu_custom_call.1} parent=1 // pred_check
      _
    $region27: #{tpu_custom_call.1} parent=1 // pred_check_branch
      %87 = sbr.rel (0) target = $region29
    $region28: #{tpu_custom_call.1} parent=1 // pred_region
      %s89 = ssub.s32 14336, 14336
      %90 = vsyncadd [#allocation12], %s89
      %s91 = sshll.u32 [#allocation13], 4
      %s92 = int_to_ptr.vmem [resolvable:$true] %s91
      %97 = dma.hbm_to_vmem [thread:$0]  %s6, 14336, %s92, [#allocation12], 128, 128, 8
    $region29: #{tpu_custom_call.1} parent=1 // pred_fallthru
      _
    // Predicated region
    $region30: #{tpu_custom_call.1} parent=1 // pred_check
      _
    $region31: #{tpu_custom_call.1} parent=1 // pred_check_branch
      %99 = sbr.rel (0) target = $region33
    $region32: #{tpu_custom_call.1} parent=1 // pred_region
      %s101 = ssub.s32 16, 16
      %102 = vsyncadd [#allocation15], %s101
      %s104 = sshll.u32 [#allocation14], 4
      %s105 = int_to_ptr.vmem [resolvable:$true] %s104
      %107 = dma.hbm_to_vmem [thread:$0]  %s7, 16, %s105, [#allocation15]
    $region33: #{tpu_custom_call.1} parent=1 // pred_fallthru
      _
    // Predicated region
    $region34: #{tpu_custom_call.1} parent=1 // pred_check
      _
    $region35: #{tpu_custom_call.1} parent=1 // pred_check_branch
      %109 = sbr.rel (0) target = $region37
    $region36: #{tpu_custom_call.1} parent=1 // pred_region
      %s111 = ssub.s32 2048, 2048
      %112 = vsyncadd [#allocation15], %s111
      %s113 = sshll.u32 [#allocation16], 4
      %s114 = int_to_ptr.vmem [resolvable:$true] %s113
      %119 = dma.hbm_to_vmem [thread:$0]  %s8, 2048, %s114, [#allocation15], 128, 128, 8
    $region37: #{tpu_custom_call.1} parent=1 // pred_fallthru
      _
    // Predicated region
    $region38: #{tpu_custom_call.1} parent=1 // pred_check
      _
    $region39: #{tpu_custom_call.1} parent=1 // pred_check_branch
      %121 = sbr.rel (0) target = $region41
    $region40: #{tpu_custom_call.1} parent=1 // pred_region
      %s123 = ssub.s32 16, 16
      %124 = vsyncadd [#allocation18], %s123
      %s126 = sshll.u32 [#allocation17], 4
      %s127 = int_to_ptr.vmem [resolvable:$true] %s126
      %129 = dma.hbm_to_vmem [thread:$0]  %s9, 16, %s127, [#allocation18]
    $region41: #{tpu_custom_call.1} parent=1 // pred_fallthru
      _
    // Predicated region
    $region42: #{tpu_custom_call.1} parent=1 // pred_check
      _
    $region43: #{tpu_custom_call.1} parent=1 // pred_check_branch
      %131 = sbr.rel (0) target = $region45
    $region44: #{tpu_custom_call.1} parent=1 // pred_region
      %132 = dma.done [#allocation3], 128
    $region45: #{tpu_custom_call.1} parent=1 // pred_fallthru
      _
    // Predicated region
    $region46: #{tpu_custom_call.1} parent=1 // pred_check
      _
    $region47: #{tpu_custom_call.1} parent=1 // pred_check_branch
      %134 = sbr.rel (0) target = $region49
    $region48: #{tpu_custom_call.1} parent=1 // pred_region
      %135 = dma.done [#allocation6], 384
    $region49: #{tpu_custom_call.1} parent=1 // pred_fallthru
      _
    // Predicated region
    $region50: #{tpu_custom_call.1} parent=1 // pred_check
      _
    $region51: #{tpu_custom_call.1} parent=1 // pred_check_branch
      %137 = sbr.rel (0) target = $region53
    $region52: #{tpu_custom_call.1} parent=1 // pred_region
      %138 = dma.done [#allocation6], 2048
    $region53: #{tpu_custom_call.1} parent=1 // pred_fallthru
      _
    // Predicated region
    $region54: #{tpu_custom_call.1} parent=1 // pred_check
      _
    $region55: #{tpu_custom_call.1} parent=1 // pred_check_branch
      %140 = sbr.rel (0) target = $region57
    $region56: #{tpu_custom_call.1} parent=1 // pred_region
      %141 = dma.done [#allocation9], 16
    $region57: #{tpu_custom_call.1} parent=1 // pred_fallthru
      _
    // Predicated region
    $region58: #{tpu_custom_call.1} parent=1 // pred_check
      _
    $region59: #{tpu_custom_call.1} parent=1 // pred_check_branch
      %143 = sbr.rel (0) target = $region61
    $region60: #{tpu_custom_call.1} parent=1 // pred_region
      %144 = dma.done [#allocation9], 2048
    $region61: #{tpu_custom_call.1} parent=1 // pred_fallthru
      _
    // Predicated region
    $region62: #{tpu_custom_call.1} parent=1 // pred_check
      _
    $region63: #{tpu_custom_call.1} parent=1 // pred_check_branch
      %146 = sbr.rel (0) target = $region65
    $region64: #{tpu_custom_call.1} parent=1 // pred_region
      %147 = dma.done [#allocation12], 16
    $region65: #{tpu_custom_call.1} parent=1 // pred_fallthru
      _
    // Predicated region
    $region66: #{tpu_custom_call.1} parent=1 // pred_check
      _
    $region67: #{tpu_custom_call.1} parent=1 // pred_check_branch
      %149 = sbr.rel (0) target = $region69
    $region68: #{tpu_custom_call.1} parent=1 // pred_region
      %150 = dma.done [#allocation12], 14336
    $region69: #{tpu_custom_call.1} parent=1 // pred_fallthru
      _
    // Predicated region
    $region70: #{tpu_custom_call.1} parent=1 // pred_check
      _
    $region71: #{tpu_custom_call.1} parent=1 // pred_check_branch
      %152 = sbr.rel (0) target = $region73
    $region72: #{tpu_custom_call.1} parent=1 // pred_region
      %153 = dma.done [#allocation15], 16
    $region73: #{tpu_custom_call.1} parent=1 // pred_fallthru
      _
    // Predicated region
    $region74: #{tpu_custom_call.1} parent=1 // pred_check
      _
    $region75: #{tpu_custom_call.1} parent=1 // pred_check_branch
      %155 = sbr.rel (0) target = $region77
    $region76: #{tpu_custom_call.1} parent=1 // pred_region
      %156 = dma.done [#allocation15], 2048
    $region77: #{tpu_custom_call.1} parent=1 // pred_fallthru
      _
    // Predicated region
    $region78: #{tpu_custom_call.1} parent=1 // pred_check
      _
    $region79: #{tpu_custom_call.1} parent=1 // pred_check_branch
      %158 = sbr.rel (0) target = $region81
    $region80: #{tpu_custom_call.1} parent=1 // pred_region
      %159 = dma.done [#allocation18], 16
    $region81: #{tpu_custom_call.1} parent=1 // pred_fallthru
      _
    %v160 = vld [vmem:[#allocation2] sm:$0xff]
    %v161 = vld [vmem:[#allocation7] sm:$0xff]
    %v162 = vld [vmem:[#allocation7 + $0x8] sm:$0xff]
    %v163 = vld [vmem:[#allocation7 + $0x10] sm:$0xff]
    %v164 = vld [vmem:[#allocation7 + $0x18] sm:$0xff]
    %v165 = vld [vmem:[#allocation7 + $0x20] sm:$0xff]
    %v166 = vld [vmem:[#allocation7 + $0x28] sm:$0xff]
    %v167 = vld [vmem:[#allocation7 + $0x30] sm:$0xff]
    %v168 = vld [vmem:[#allocation7 + $0x38] sm:$0xff]
    %v169 = vld [vmem:[#allocation7 + $0x40] sm:$0xff]
    %v170 = vld [vmem:[#allocation7 + $0x48] sm:$0xff]
    %v171 = vld [vmem:[#allocation7 + $0x50] sm:$0xff]
    %v172 = vld [vmem:[#allocation7 + $0x58] sm:$0xff]
    %v173 = vld [vmem:[#allocation7 + $0x60] sm:$0xff]
    %v174 = vld [vmem:[#allocation7 + $0x68] sm:$0xff]
    %v175 = vld [vmem:[#allocation7 + $0x70] sm:$0xff]
    %v176 = vld [vmem:[#allocation7 + $0x78] sm:$0xff]
    %v177 = vld [vmem:[#allocation8] sm:$0x1]
    %v179 = vlaneseq
    %v180 = vshrl.u32 %v179, 7
    %v181 = vsub.s32 0, %v180
    %v182 = vrot.slane %v177, %v181
    %184 = vmatprep.subr.mxu0 0.0
    %185 = vmatpush1.msra.mxu0 %v161
    %186 = vmatprep.subr.mxu0 0.0
    %187 = vmatpush1.msra.mxu0 %v162
    %188 = vmatprep.subr.mxu0 0.0
    %189 = vmatpush1.msra.mxu0 %v163
    %190 = vmatprep.subr.mxu0 0.0
    %191 = vmatpush1.msra.mxu0 %v164
    %192 = vmatprep.subr.mxu0 0.0
    %193 = vmatpush1.msra.mxu0 %v165
    %194 = vmatprep.subr.mxu0 0.0
    %195 = vmatpush1.msra.mxu0 %v166
    %196 = vmatprep.subr.mxu0 0.0
    %197 = vmatpush1.msra.mxu0 %v167
    %198 = vmatprep.subr.mxu0 0.0
    %199 = vmatpush1.msra.mxu0 %v168
    %200 = vmatprep.subr.mxu0 0.0
    %201 = vmatpush1.msra.mxu0 %v169
    %202 = vmatprep.subr.mxu0 0.0
    %203 = vmatpush1.msra.mxu0 %v170
    %204 = vmatprep.subr.mxu0 0.0
    %205 = vmatpush1.msra.mxu0 %v171
    %206 = vmatprep.subr.mxu0 0.0
    %207 = vmatpush1.msra.mxu0 %v172
    %208 = vmatprep.subr.mxu0 0.0
    %209 = vmatpush1.msra.mxu0 %v173
    %210 = vmatprep.subr.mxu0 0.0
    %211 = vmatpush1.msra.mxu0 %v174
    %212 = vmatprep.subr.mxu0 0.0
    %213 = vmatpush1.msra.mxu0 %v175
    %214 = vmatprep.subr.mxu0 0.0
    %215 = vmatpush1.msra.mxu0 %v176
    %216 = vmatprep.subr.mxu0 0.0
    %217 = vmatpush1.msra.mxu0 0.0
    %218 = vmatprep.subr.mxu0 0.0
    %219 = vmatpush1.msra.mxu0 0.0
    %220 = vmatprep.subr.mxu0 0.0
    %221 = vmatpush1.msra.mxu0 0.0
    %222 = vmatprep.subr.mxu0 0.0
    %223 = vmatpush1.msra.mxu0 0.0
    %224 = vmatprep.subr.mxu0 0.0
    %225 = vmatpush1.msra.mxu0 0.0
    %226 = vmatprep.subr.mxu0 0.0
    %227 = vmatpush1.msra.mxu0 0.0
    %228 = vmatprep.subr.mxu0 0.0
    %229 = vmatpush1.msra.mxu0 0.0
    %230 = vmatprep.subr.mxu0 0.0
    %231 = vmatpush1.msra.mxu0 0.0
    %232 = vmatprep.subr.mxu0 0.0
    %233 = vmatpush1.msra.mxu0 0.0
    %234 = vmatprep.subr.mxu0 0.0
    %235 = vmatpush1.msra.mxu0 0.0
    %236 = vmatprep.subr.mxu0 0.0
    %237 = vmatpush1.msra.mxu0 0.0
    %238 = vmatprep.subr.mxu0 0.0
    %239 = vmatpush1.msra.mxu0 0.0
    %240 = vmatprep.subr.mxu0 0.0
    %241 = vmatpush1.msra.mxu0 0.0
    %242 = vmatprep.subr.mxu0 0.0
    %243 = vmatpush1.msra.mxu0 0.0
    %244 = vmatprep.subr.mxu0 0.0
    %245 = vmatpush1.msra.mxu0 0.0
    %246 = vmatprep.subr.mxu0 0.0
    %247 = vmatpush1.msra.mxu0 0.0
    %248 = vmatprep.mubr.f32.mxu0 0.0
    %249 = vmatmul.mubr.f32.gmra.mrb[0].mxu0 %v160
    %v250 = vpop.f32.mrb[0].mxu0
    %v251 = vadd.f32 %v182, %v250
    %v252 = vpop.f32.mrb[0].mxu0
    %253 = vdwg.mxu0
    %v254 = vmax.f32 %v251, 0.0
    %v255 = vld [vmem:[#allocation10] sm:$0xff]
    %v256 = vld [vmem:[#allocation10 + $0x8] sm:$0xff]
    %v257 = vld [vmem:[#allocation10 + $0x10] sm:$0xff]
    %v258 = vld [vmem:[#allocation10 + $0x18] sm:$0xff]
    %v259 = vld [vmem:[#allocation10 + $0x20] sm:$0xff]
    %v260 = vld [vmem:[#allocation10 + $0x28] sm:$0xff]
    %v261 = vld [vmem:[#allocation10 + $0x30] sm:$0xff]
    %v262 = vld [vmem:[#allocation10 + $0x38] sm:$0xff]
    %v263 = vld [vmem:[#allocation10 + $0x40] sm:$0xff]
    %v264 = vld [vmem:[#allocation10 + $0x48] sm:$0xff]
    %v265 = vld [vmem:[#allocation10 + $0x50] sm:$0xff]
    %v266 = vld [vmem:[#allocation10 + $0x58] sm:$0xff]
    %v267 = vld [vmem:[#allocation10 + $0x60] sm:$0xff]
    %v268 = vld [vmem:[#allocation10 + $0x68] sm:$0xff]
    %v269 = vld [vmem:[#allocation10 + $0x70] sm:$0xff]
    %v270 = vld [vmem:[#allocation10 + $0x78] sm:$0xff]
    %v271 = vld [vmem:[#allocation11] sm:$0x1]
    %v273 = vlaneseq
    %v274 = vshrl.u32 %v273, 7
    %v275 = vsub.s32 0, %v274
    %v276 = vrot.slane %v271, %v275
    %278 = vmatprep.subr.mxu0 0.0
    %279 = vmatpush1.msra.mxu0 %v255
    %280 = vmatprep.subr.mxu0 0.0
    %281 = vmatpush1.msra.mxu0 %v256
    %282 = vmatprep.subr.mxu0 0.0
    %283 = vmatpush1.msra.mxu0 %v257
    %284 = vmatprep.subr.mxu0 0.0
    %285 = vmatpush1.msra.mxu0 %v258
    %286 = vmatprep.subr.mxu0 0.0
    %287 = vmatpush1.msra.mxu0 %v259
    %288 = vmatprep.subr.mxu0 0.0
    %289 = vmatpush1.msra.mxu0 %v260
    %290 = vmatprep.subr.mxu0 0.0
    %291 = vmatpush1.msra.mxu0 %v261
    %292 = vmatprep.subr.mxu0 0.0
    %293 = vmatpush1.msra.mxu0 %v262
    %294 = vmatprep.subr.mxu0 0.0
    %295 = vmatpush1.msra.mxu0 %v263
    %296 = vmatprep.subr.mxu0 0.0
    %297 = vmatpush1.msra.mxu0 %v264
    %298 = vmatprep.subr.mxu0 0.0
    %299 = vmatpush1.msra.mxu0 %v265
    %300 = vmatprep.subr.mxu0 0.0
    %301 = vmatpush1.msra.mxu0 %v266
    %302 = vmatprep.subr.mxu0 0.0
    %303 = vmatpush1.msra.mxu0 %v267
    %304 = vmatprep.subr.mxu0 0.0
    %305 = vmatpush1.msra.mxu0 %v268
    %306 = vmatprep.subr.mxu0 0.0
    %307 = vmatpush1.msra.mxu0 %v269
    %308 = vmatprep.subr.mxu0 0.0
    %309 = vmatpush1.msra.mxu0 %v270
    %310 = vmatprep.subr.mxu0 0.0
    %311 = vmatpush1.msra.mxu0 0.0
    %312 = vmatprep.subr.mxu0 0.0
    %313 = vmatpush1.msra.mxu0 0.0
    %314 = vmatprep.subr.mxu0 0.0
    %315 = vmatpush1.msra.mxu0 0.0
    %316 = vmatprep.subr.mxu0 0.0
    %317 = vmatpush1.msra.mxu0 0.0
    %318 = vmatprep.subr.mxu0 0.0
    %319 = vmatpush1.msra.mxu0 0.0
    %320 = vmatprep.subr.mxu0 0.0
    %321 = vmatpush1.msra.mxu0 0.0
    %322 = vmatprep.subr.mxu0 0.0
    %323 = vmatpush1.msra.mxu0 0.0
    %324 = vmatprep.subr.mxu0 0.0
    %325 = vmatpush1.msra.mxu0 0.0
    %326 = vmatprep.subr.mxu0 0.0
    %327 = vmatpush1.msra.mxu0 0.0
    %328 = vmatprep.subr.mxu0 0.0
    %329 = vmatpush1.msra.mxu0 0.0
    %330 = vmatprep.subr.mxu0 0.0
    %331 = vmatpush1.msra.mxu0 0.0
    %332 = vmatprep.subr.mxu0 0.0
    %333 = vmatpush1.msra.mxu0 0.0
    %334 = vmatprep.subr.mxu0 0.0
    %335 = vmatpush1.msra.mxu0 0.0
    %336 = vmatprep.subr.mxu0 0.0
    %337 = vmatpush1.msra.mxu0 0.0
    %338 = vmatprep.subr.mxu0 0.0
    %339 = vmatpush1.msra.mxu0 0.0
    %340 = vmatprep.subr.mxu0 0.0
    %341 = vmatpush1.msra.mxu0 0.0
    %342 = vmatprep.mubr.f32.mxu0 0.0
    %343 = vmatmul.mubr.f32.gmra.mrb[0].mxu0 %v254
    %v344 = vpop.f32.mrb[0].mxu0
    %v345 = vadd.f32 %v276, %v344
    %v346 = vpop.f32.mrb[0].mxu0
    %347 = vdwg.mxu0
    %v348 = vmax.f32 %v345, 0.0
    %v349 = vld [vmem:[#allocation5] sm:$0xff]
    %v350 = vld [vmem:[#allocation5 + $0x8] sm:$0xff]
    %v351 = vld [vmem:[#allocation5 + $0x10] sm:$0xff]
    %v352 = vmul.f32 %v349, %v348
    %v353 = vmul.f32 %v350, %v348
    %v354 = vmul.f32 %v350, %v349
    %v355 = vmul.f32 %v351, %v348
    %v356 = vmul.f32 %v351, %v349
    %v357 = vmul.f32 %v351, %v350
    %v358 = vld [vmem:[#allocation13] sm:$0xff]
    %v359 = vld [vmem:[#allocation13 + $0x8] sm:$0xff]
    %v360 = vld [vmem:[#allocation13 + $0x10] sm:$0xff]
    %v361 = vld [vmem:[#allocation13 + $0x18] sm:$0xff]
    %v362 = vld [vmem:[#allocation13 + $0x20] sm:$0xff]
    %v363 = vld [vmem:[#allocation13 + $0x28] sm:$0xff]
    %v364 = vld [vmem:[#allocation13 + $0x30] sm:$0xff]
    %v365 = vld [vmem:[#allocation13 + $0x38] sm:$0xff]
    %v366 = vld [vmem:[#allocation13 + $0x40] sm:$0xff]
    %v367 = vld [vmem:[#allocation13 + $0x48] sm:$0xff]
    %v368 = vld [vmem:[#allocation13 + $0x50] sm:$0xff]
    %v369 = vld [vmem:[#allocation13 + $0x58] sm:$0xff]
    %v370 = vld [vmem:[#allocation13 + $0x60] sm:$0xff]
    %v371 = vld [vmem:[#allocation13 + $0x68] sm:$0xff]
    %v372 = vld [vmem:[#allocation13 + $0x70] sm:$0xff]
    %v373 = vld [vmem:[#allocation13 + $0x78] sm:$0xff]
    %v374 = vld [vmem:[#allocation13 + $0x80] sm:$0xff]
    %v375 = vld [vmem:[#allocation13 + $0x88] sm:$0xff]
    %v376 = vld [vmem:[#allocation13 + $0x90] sm:$0xff]
    %v377 = vld [vmem:[#allocation13 + $0x98] sm:$0xff]
    %v378 = vld [vmem:[#allocation13 + $0xa0] sm:$0xff]
    %v379 = vld [vmem:[#allocation13 + $0xa8] sm:$0xff]
    %v380 = vld [vmem:[#allocation13 + $0xb0] sm:$0xff]
    %v381 = vld [vmem:[#allocation13 + $0xb8] sm:$0xff]
    %v382 = vld [vmem:[#allocation13 + $0xc0] sm:$0xff]
    %v383 = vld [vmem:[#allocation13 + $0xc8] sm:$0xff]
    %v384 = vld [vmem:[#allocation13 + $0xd0] sm:$0xff]
    %v385 = vld [vmem:[#allocation13 + $0xd8] sm:$0xff]
    %v386 = vld [vmem:[#allocation13 + $0xe0] sm:$0xff]
    %v387 = vld [vmem:[#allocation13 + $0xe8] sm:$0xff]
    %v388 = vld [vmem:[#allocation13 + $0xf0] sm:$0xff]
    %v389 = vld [vmem:[#allocation13 + $0xf8] sm:$0xff]
    %v390 = vld [vmem:[#allocation13 + $0x100] sm:$0xff]
    %v391 = vld [vmem:[#allocation13 + $0x108] sm:$0xff]
    %v392 = vld [vmem:[#allocation13 + $0x110] sm:$0xff]
    %v393 = vld [vmem:[#allocation13 + $0x118] sm:$0xff]
    %v394 = vld [vmem:[#allocation13 + $0x120] sm:$0xff]
    %v395 = vld [vmem:[#allocation13 + $0x128] sm:$0xff]
    %v396 = vld [vmem:[#allocation13 + $0x130] sm:$0xff]
    %v397 = vld [vmem:[#allocation13 + $0x138] sm:$0xff]
    %v398 = vld [vmem:[#allocation13 + $0x140] sm:$0xff]
    %v399 = vld [vmem:[#allocation13 + $0x148] sm:$0xff]
    %v400 = vld [vmem:[#allocation13 + $0x150] sm:$0xff]
    %v401 = vld [vmem:[#allocation13 + $0x158] sm:$0xff]
    %v402 = vld [vmem:[#allocation13 + $0x160] sm:$0xff]
    %v403 = vld [vmem:[#allocation13 + $0x168] sm:$0xff]
    %v404 = vld [vmem:[#allocation13 + $0x170] sm:$0xff]
    %v405 = vld [vmem:[#allocation13 + $0x178] sm:$0xff]
    %v406 = vld [vmem:[#allocation13 + $0x180] sm:$0xff]
    %v407 = vld [vmem:[#allocation13 + $0x188] sm:$0xff]
    %v408 = vld [vmem:[#allocation13 + $0x190] sm:$0xff]
    %v409 = vld [vmem:[#allocation13 + $0x198] sm:$0xff]
    %v410 = vld [vmem:[#allocation13 + $0x1a0] sm:$0xff]
    %v411 = vld [vmem:[#allocation13 + $0x1a8] sm:$0xff]
    %v412 = vld [vmem:[#allocation13 + $0x1b0] sm:$0xff]
    %v413 = vld [vmem:[#allocation13 + $0x1b8] sm:$0xff]
    %v414 = vld [vmem:[#allocation13 + $0x1c0] sm:$0xff]
    %v415 = vld [vmem:[#allocation13 + $0x1c8] sm:$0xff]
    %v416 = vld [vmem:[#allocation13 + $0x1d0] sm:$0xff]
    %v417 = vld [vmem:[#allocation13 + $0x1d8] sm:$0xff]
    %v418 = vld [vmem:[#allocation13 + $0x1e0] sm:$0xff]
    %v419 = vld [vmem:[#allocation13 + $0x1e8] sm:$0xff]
    %v420 = vld [vmem:[#allocation13 + $0x1f0] sm:$0xff]
    %v421 = vld [vmem:[#allocation13 + $0x1f8] sm:$0xff]
    %v422 = vld [vmem:[#allocation13 + $0x200] sm:$0xff]
    %v423 = vld [vmem:[#allocation13 + $0x208] sm:$0xff]
    %v424 = vld [vmem:[#allocation13 + $0x210] sm:$0xff]
    %v425 = vld [vmem:[#allocation13 + $0x218] sm:$0xff]
    %v426 = vld [vmem:[#allocation13 + $0x220] sm:$0xff]
    %v427 = vld [vmem:[#allocation13 + $0x228] sm:$0xff]
    %v428 = vld [vmem:[#allocation13 + $0x230] sm:$0xff]
    %v429 = vld [vmem:[#allocation13 + $0x238] sm:$0xff]
    %v430 = vld [vmem:[#allocation13 + $0x240] sm:$0xff]
    %v431 = vld [vmem:[#allocation13 + $0x248] sm:$0xff]
    %v432 = vld [vmem:[#allocation13 + $0x250] sm:$0xff]
    %v433 = vld [vmem:[#allocation13 + $0x258] sm:$0xff]
    %v434 = vld [vmem:[#allocation13 + $0x260] sm:$0xff]
    %v435 = vld [vmem:[#allocation13 + $0x268] sm:$0xff]
    %v436 = vld [vmem:[#allocation13 + $0x270] sm:$0xff]
    %v437 = vld [vmem:[#allocation13 + $0x278] sm:$0xff]
    %v438 = vld [vmem:[#allocation13 + $0x280] sm:$0xff]
    %v439 = vld [vmem:[#allocation13 + $0x288] sm:$0xff]
    %v440 = vld [vmem:[#allocation13 + $0x290] sm:$0xff]
    %v441 = vld [vmem:[#allocation13 + $0x298] sm:$0xff]
    %v442 = vld [vmem:[#allocation13 + $0x2a0] sm:$0xff]
    %v443 = vld [vmem:[#allocation13 + $0x2a8] sm:$0xff]
    %v444 = vld [vmem:[#allocation13 + $0x2b0] sm:$0xff]
    %v445 = vld [vmem:[#allocation13 + $0x2b8] sm:$0xff]
    %v446 = vld [vmem:[#allocation13 + $0x2c0] sm:$0xff]
    %v447 = vld [vmem:[#allocation13 + $0x2c8] sm:$0xff]
    %v448 = vld [vmem:[#allocation13 + $0x2d0] sm:$0xff]
    %v449 = vld [vmem:[#allocation13 + $0x2d8] sm:$0xff]
    %v450 = vld [vmem:[#allocation13 + $0x2e0] sm:$0xff]
    %v451 = vld [vmem:[#allocation13 + $0x2e8] sm:$0xff]
    %v452 = vld [vmem:[#allocation13 + $0x2f0] sm:$0xff]
    %v453 = vld [vmem:[#allocation13 + $0x2f8] sm:$0xff]
    %v454 = vld [vmem:[#allocation13 + $0x300] sm:$0xff]
    %v455 = vld [vmem:[#allocation13 + $0x308] sm:$0xff]
    %v456 = vld [vmem:[#allocation13 + $0x310] sm:$0xff]
    %v457 = vld [vmem:[#allocation13 + $0x318] sm:$0xff]
    %v458 = vld [vmem:[#allocation13 + $0x320] sm:$0xff]
    %v459 = vld [vmem:[#allocation13 + $0x328] sm:$0xff]
    %v460 = vld [vmem:[#allocation13 + $0x330] sm:$0xff]
    %v461 = vld [vmem:[#allocation13 + $0x338] sm:$0xff]
    %v462 = vld [vmem:[#allocation13 + $0x340] sm:$0xff]
    %v463 = vld [vmem:[#allocation13 + $0x348] sm:$0xff]
    %v464 = vld [vmem:[#allocation13 + $0x350] sm:$0xff]
    %v465 = vld [vmem:[#allocation13 + $0x358] sm:$0xff]
    %v466 = vld [vmem:[#allocation13 + $0x360] sm:$0xff]
    %v467 = vld [vmem:[#allocation13 + $0x368] sm:$0xff]
    %v468 = vld [vmem:[#allocation13 + $0x370] sm:$0xff]
    %v469 = vld [vmem:[#allocation13 + $0x378] sm:$0xff]
    %v470 = vld [vmem:[#allocation14] sm:$0x1]
    %v472 = vlaneseq
    %v473 = vshrl.u32 %v472, 7
    %v474 = vsub.s32 0, %v473
    %v475 = vrot.slane %v470, %v474
    %477 = vmatprep.subr.mxu0 0.0
    %478 = vmatpush1.msra.mxu0 %v358
    %479 = vmatprep.subr.mxu0 0.0
    %480 = vmatpush1.msra.mxu0 %v359
    %481 = vmatprep.subr.mxu0 0.0
    %482 = vmatpush1.msra.mxu0 %v360
    %483 = vmatprep.subr.mxu0 0.0
    %484 = vmatpush1.msra.mxu0 %v361
    %485 = vmatprep.subr.mxu0 0.0
    %486 = vmatpush1.msra.mxu0 %v362
    %487 = vmatprep.subr.mxu0 0.0
    %488 = vmatpush1.msra.mxu0 %v363
    %489 = vmatprep.subr.mxu0 0.0
    %490 = vmatpush1.msra.mxu0 %v364
    %491 = vmatprep.subr.mxu0 0.0
    %492 = vmatpush1.msra.mxu0 %v365
    %493 = vmatprep.subr.mxu0 0.0
    %494 = vmatpush1.msra.mxu0 %v366
    %495 = vmatprep.subr.mxu0 0.0
    %496 = vmatpush1.msra.mxu0 %v367
    %497 = vmatprep.subr.mxu0 0.0
    %498 = vmatpush1.msra.mxu0 %v368
    %499 = vmatprep.subr.mxu0 0.0
    %500 = vmatpush1.msra.mxu0 %v369
    %501 = vmatprep.subr.mxu0 0.0
    %502 = vmatpush1.msra.mxu0 %v370
    %503 = vmatprep.subr.mxu0 0.0
    %504 = vmatpush1.msra.mxu0 %v371
    %505 = vmatprep.subr.mxu0 0.0
    %506 = vmatpush1.msra.mxu0 %v372
    %507 = vmatprep.subr.mxu0 0.0
    %508 = vmatpush1.msra.mxu0 %v373
    %509 = vmatprep.subr.mxu0 0.0
    %510 = vmatpush1.msra.mxu0 %v374
    %511 = vmatprep.subr.mxu0 0.0
    %512 = vmatpush1.msra.mxu0 %v375
    %513 = vmatprep.subr.mxu0 0.0
    %514 = vmatpush1.msra.mxu0 %v376
    %515 = vmatprep.subr.mxu0 0.0
    %516 = vmatpush1.msra.mxu0 %v377
    %517 = vmatprep.subr.mxu0 0.0
    %518 = vmatpush1.msra.mxu0 %v378
    %519 = vmatprep.subr.mxu0 0.0
    %520 = vmatpush1.msra.mxu0 %v379
    %521 = vmatprep.subr.mxu0 0.0
    %522 = vmatpush1.msra.mxu0 %v380
    %523 = vmatprep.subr.mxu0 0.0
    %524 = vmatpush1.msra.mxu0 %v381
    %525 = vmatprep.subr.mxu0 0.0
    %526 = vmatpush1.msra.mxu0 %v382
    %527 = vmatprep.subr.mxu0 0.0
    %528 = vmatpush1.msra.mxu0 %v383
    %529 = vmatprep.subr.mxu0 0.0
    %530 = vmatpush1.msra.mxu0 %v384
    %531 = vmatprep.subr.mxu0 0.0
    %532 = vmatpush1.msra.mxu0 %v385
    %533 = vmatprep.subr.mxu0 0.0
    %534 = vmatpush1.msra.mxu0 %v386
    %535 = vmatprep.subr.mxu0 0.0
    %536 = vmatpush1.msra.mxu0 %v387
    %537 = vmatprep.subr.mxu0 0.0
    %538 = vmatpush1.msra.mxu0 %v388
    %539 = vmatprep.subr.mxu0 0.0
    %540 = vmatpush1.msra.mxu0 %v389
    %541 = vmatprep.mubr.f32.mxu0 %v352
    %542 = vmatmul.mubr.f32.gmra.mrb[0].mxu0 %v348
    %v543 = vpop.f32.mrb[0].mxu0
    %v544 = vadd.f32 %v475, %v543
    %v545 = vpop.f32.mrb[0].mxu0
    %546 = vdwg.mxu0
    %547 = vmatprep.subr.mxu0 0.0
    %548 = vmatpush1.msra.mxu0 %v390
    %549 = vmatprep.subr.mxu0 0.0
    %550 = vmatpush1.msra.mxu0 %v391
    %551 = vmatprep.subr.mxu0 0.0
    %552 = vmatpush1.msra.mxu0 %v392
    %553 = vmatprep.subr.mxu0 0.0
    %554 = vmatpush1.msra.mxu0 %v393
    %555 = vmatprep.subr.mxu0 0.0
    %556 = vmatpush1.msra.mxu0 %v394
    %557 = vmatprep.subr.mxu0 0.0
    %558 = vmatpush1.msra.mxu0 %v395
    %559 = vmatprep.subr.mxu0 0.0
    %560 = vmatpush1.msra.mxu0 %v396
    %561 = vmatprep.subr.mxu0 0.0
    %562 = vmatpush1.msra.mxu0 %v397
    %563 = vmatprep.subr.mxu0 0.0
    %564 = vmatpush1.msra.mxu0 %v398
    %565 = vmatprep.subr.mxu0 0.0
    %566 = vmatpush1.msra.mxu0 %v399
    %567 = vmatprep.subr.mxu0 0.0
    %568 = vmatpush1.msra.mxu0 %v400
    %569 = vmatprep.subr.mxu0 0.0
    %570 = vmatpush1.msra.mxu0 %v401
    %571 = vmatprep.subr.mxu0 0.0
    %572 = vmatpush1.msra.mxu0 %v402
    %573 = vmatprep.subr.mxu0 0.0
    %574 = vmatpush1.msra.mxu0 %v403
    %575 = vmatprep.subr.mxu0 0.0
    %576 = vmatpush1.msra.mxu0 %v404
    %577 = vmatprep.subr.mxu0 0.0
    %578 = vmatpush1.msra.mxu0 %v405
    %579 = vmatprep.subr.mxu0 0.0
    %580 = vmatpush1.msra.mxu0 %v406
    %581 = vmatprep.subr.mxu0 0.0
    %582 = vmatpush1.msra.mxu0 %v407
    %583 = vmatprep.subr.mxu0 0.0
    %584 = vmatpush1.msra.mxu0 %v408
    %585 = vmatprep.subr.mxu0 0.0
    %586 = vmatpush1.msra.mxu0 %v409
    %587 = vmatprep.subr.mxu0 0.0
    %588 = vmatpush1.msra.mxu0 %v410
    %589 = vmatprep.subr.mxu0 0.0
    %590 = vmatpush1.msra.mxu0 %v411
    %591 = vmatprep.subr.mxu0 0.0
    %592 = vmatpush1.msra.mxu0 %v412
    %593 = vmatprep.subr.mxu0 0.0
    %594 = vmatpush1.msra.mxu0 %v413
    %595 = vmatprep.subr.mxu0 0.0
    %596 = vmatpush1.msra.mxu0 %v414
    %597 = vmatprep.subr.mxu0 0.0
    %598 = vmatpush1.msra.mxu0 %v415
    %599 = vmatprep.subr.mxu0 0.0
    %600 = vmatpush1.msra.mxu0 %v416
    %601 = vmatprep.subr.mxu0 0.0
    %602 = vmatpush1.msra.mxu0 %v417
    %603 = vmatprep.subr.mxu0 0.0
    %604 = vmatpush1.msra.mxu0 %v418
    %605 = vmatprep.subr.mxu0 0.0
    %606 = vmatpush1.msra.mxu0 %v419
    %607 = vmatprep.subr.mxu0 0.0
    %608 = vmatpush1.msra.mxu0 %v420
    %609 = vmatprep.subr.mxu0 0.0
    %610 = vmatpush1.msra.mxu0 %v421
    %611 = vmatprep.mubr.f32.mxu0 %v354
    %612 = vmatmul.mubr.f32.gmra.mrb[0].mxu0 %v353
    %v613 = vpop.f32.mrb[0].mxu0
    %v614 = vadd.f32 %v544, %v613
    %v615 = vpop.f32.mrb[0].mxu0
    %616 = vdwg.mxu0
    %617 = vmatprep.subr.mxu0 0.0
    %618 = vmatpush1.msra.mxu0 %v422
    %619 = vmatprep.subr.mxu0 0.0
    %620 = vmatpush1.msra.mxu0 %v423
    %621 = vmatprep.subr.mxu0 0.0
    %622 = vmatpush1.msra.mxu0 %v424
    %623 = vmatprep.subr.mxu0 0.0
    %624 = vmatpush1.msra.mxu0 %v425
    %625 = vmatprep.subr.mxu0 0.0
    %626 = vmatpush1.msra.mxu0 %v426
    %627 = vmatprep.subr.mxu0 0.0
    %628 = vmatpush1.msra.mxu0 %v427
    %629 = vmatprep.subr.mxu0 0.0
    %630 = vmatpush1.msra.mxu0 %v428
    %631 = vmatprep.subr.mxu0 0.0
    %632 = vmatpush1.msra.mxu0 %v429
    %633 = vmatprep.subr.mxu0 0.0
    %634 = vmatpush1.msra.mxu0 %v430
    %635 = vmatprep.subr.mxu0 0.0
    %636 = vmatpush1.msra.mxu0 %v431
    %637 = vmatprep.subr.mxu0 0.0
    %638 = vmatpush1.msra.mxu0 %v432
    %639 = vmatprep.subr.mxu0 0.0
    %640 = vmatpush1.msra.mxu0 %v433
    %641 = vmatprep.subr.mxu0 0.0
    %642 = vmatpush1.msra.mxu0 %v434
    %643 = vmatprep.subr.mxu0 0.0
    %644 = vmatpush1.msra.mxu0 %v435
    %645 = vmatprep.subr.mxu0 0.0
    %646 = vmatpush1.msra.mxu0 %v436
    %647 = vmatprep.subr.mxu0 0.0
    %648 = vmatpush1.msra.mxu0 %v437
    %649 = vmatprep.subr.mxu0 0.0
    %650 = vmatpush1.msra.mxu0 %v438
    %651 = vmatprep.subr.mxu0 0.0
    %652 = vmatpush1.msra.mxu0 %v439
    %653 = vmatprep.subr.mxu0 0.0
    %654 = vmatpush1.msra.mxu0 %v440
    %655 = vmatprep.subr.mxu0 0.0
    %656 = vmatpush1.msra.mxu0 %v441
    %657 = vmatprep.subr.mxu0 0.0
    %658 = vmatpush1.msra.mxu0 %v442
    %659 = vmatprep.subr.mxu0 0.0
    %660 = vmatpush1.msra.mxu0 %v443
    %661 = vmatprep.subr.mxu0 0.0
    %662 = vmatpush1.msra.mxu0 %v444
    %663 = vmatprep.subr.mxu0 0.0
    %664 = vmatpush1.msra.mxu0 %v445
    %665 = vmatprep.subr.mxu0 0.0
    %666 = vmatpush1.msra.mxu0 %v446
    %667 = vmatprep.subr.mxu0 0.0
    %668 = vmatpush1.msra.mxu0 %v447
    %669 = vmatprep.subr.mxu0 0.0
    %670 = vmatpush1.msra.mxu0 %v448
    %671 = vmatprep.subr.mxu0 0.0
    %672 = vmatpush1.msra.mxu0 %v449
    %673 = vmatprep.subr.mxu0 0.0
    %674 = vmatpush1.msra.mxu0 %v450
    %675 = vmatprep.subr.mxu0 0.0
    %676 = vmatpush1.msra.mxu0 %v451
    %677 = vmatprep.subr.mxu0 0.0
    %678 = vmatpush1.msra.mxu0 %v452
    %679 = vmatprep.subr.mxu0 0.0
    %680 = vmatpush1.msra.mxu0 %v453
    %681 = vmatprep.mubr.f32.mxu0 %v356
    %682 = vmatmul.mubr.f32.gmra.mrb[0].mxu0 %v355
    %v683 = vpop.f32.mrb[0].mxu0
    %v684 = vadd.f32 %v614, %v683
    %v685 = vpop.f32.mrb[0].mxu0
    %686 = vdwg.mxu0
    %687 = vmatprep.subr.mxu0 0.0
    %688 = vmatpush1.msra.mxu0 %v454
    %689 = vmatprep.subr.mxu0 0.0
    %690 = vmatpush1.msra.mxu0 %v455
    %691 = vmatprep.subr.mxu0 0.0
    %692 = vmatpush1.msra.mxu0 %v456
    %693 = vmatprep.subr.mxu0 0.0
    %694 = vmatpush1.msra.mxu0 %v457
    %695 = vmatprep.subr.mxu0 0.0
    %696 = vmatpush1.msra.mxu0 %v458
    %697 = vmatprep.subr.mxu0 0.0
    %698 = vmatpush1.msra.mxu0 %v459
    %699 = vmatprep.subr.mxu0 0.0
    %700 = vmatpush1.msra.mxu0 %v460
    %701 = vmatprep.subr.mxu0 0.0
    %702 = vmatpush1.msra.mxu0 %v461
    %703 = vmatprep.subr.mxu0 0.0
    %704 = vmatpush1.msra.mxu0 %v462
    %705 = vmatprep.subr.mxu0 0.0
    %706 = vmatpush1.msra.mxu0 %v463
    %707 = vmatprep.subr.mxu0 0.0
    %708 = vmatpush1.msra.mxu0 %v464
    %709 = vmatprep.subr.mxu0 0.0
    %710 = vmatpush1.msra.mxu0 %v465
    %711 = vmatprep.subr.mxu0 0.0
    %712 = vmatpush1.msra.mxu0 %v466
    %713 = vmatprep.subr.mxu0 0.0
    %714 = vmatpush1.msra.mxu0 %v467
    %715 = vmatprep.subr.mxu0 0.0
    %716 = vmatpush1.msra.mxu0 %v468
    %717 = vmatprep.subr.mxu0 0.0
    %718 = vmatpush1.msra.mxu0 %v469
    %719 = vmatprep.subr.mxu0 0.0
    %720 = vmatpush1.msra.mxu0 0.0
    %721 = vmatprep.subr.mxu0 0.0
    %722 = vmatpush1.msra.mxu0 0.0
    %723 = vmatprep.subr.mxu0 0.0
    %724 = vmatpush1.msra.mxu0 0.0
    %725 = vmatprep.subr.mxu0 0.0
    %726 = vmatpush1.msra.mxu0 0.0
    %727 = vmatprep.subr.mxu0 0.0
    %728 = vmatpush1.msra.mxu0 0.0
    %729 = vmatprep.subr.mxu0 0.0
    %730 = vmatpush1.msra.mxu0 0.0
    %731 = vmatprep.subr.mxu0 0.0
    %732 = vmatpush1.msra.mxu0 0.0
    %733 = vmatprep.subr.mxu0 0.0
    %734 = vmatpush1.msra.mxu0 0.0
    %735 = vmatprep.subr.mxu0 0.0
    %736 = vmatpush1.msra.mxu0 0.0
    %737 = vmatprep.subr.mxu0 0.0
    %738 = vmatpush1.msra.mxu0 0.0
    %739 = vmatprep.subr.mxu0 0.0
    %740 = vmatpush1.msra.mxu0 0.0
    %741 = vmatprep.subr.mxu0 0.0
    %742 = vmatpush1.msra.mxu0 0.0
    %743 = vmatprep.subr.mxu0 0.0
    %744 = vmatpush1.msra.mxu0 0.0
    %745 = vmatprep.subr.mxu0 0.0
    %746 = vmatpush1.msra.mxu0 0.0
    %747 = vmatprep.subr.mxu0 0.0
    %748 = vmatpush1.msra.mxu0 0.0
    %749 = vmatprep.subr.mxu0 0.0
    %750 = vmatpush1.msra.mxu0 0.0
    %751 = vmatprep.mubr.f32.mxu0 0.0
    %752 = vmatmul.mubr.f32.gmra.mrb[0].mxu0 %v357
    %v753 = vpop.f32.mrb[0].mxu0
    %v754 = vadd.f32 %v684, %v753
    %v755 = vpop.f32.mrb[0].mxu0
    %756 = vdwg.mxu0
    %v757 = vmax.f32 %v754, 0.0
    %v758 = vld [vmem:[#allocation16] sm:$0xff]
    %v759 = vld [vmem:[#allocation16 + $0x8] sm:$0xff]
    %v760 = vld [vmem:[#allocation16 + $0x10] sm:$0xff]
    %v761 = vld [vmem:[#allocation16 + $0x18] sm:$0xff]
    %v762 = vld [vmem:[#allocation16 + $0x20] sm:$0xff]
    %v763 = vld [vmem:[#allocation16 + $0x28] sm:$0xff]
    %v764 = vld [vmem:[#allocation16 + $0x30] sm:$0xff]
    %v765 = vld [vmem:[#allocation16 + $0x38] sm:$0xff]
    %v766 = vld [vmem:[#allocation16 + $0x40] sm:$0xff]
    %v767 = vld [vmem:[#allocation16 + $0x48] sm:$0xff]
    %v768 = vld [vmem:[#allocation16 + $0x50] sm:$0xff]
    %v769 = vld [vmem:[#allocation16 + $0x58] sm:$0xff]
    %v770 = vld [vmem:[#allocation16 + $0x60] sm:$0xff]
    %v771 = vld [vmem:[#allocation16 + $0x68] sm:$0xff]
    %v772 = vld [vmem:[#allocation16 + $0x70] sm:$0xff]
    %v773 = vld [vmem:[#allocation16 + $0x78] sm:$0xff]
    %v774 = vld [vmem:[#allocation17] sm:$0x1]
    %v776 = vlaneseq
    %v777 = vshrl.u32 %v776, 7
    %v778 = vsub.s32 0, %v777
    %v779 = vrot.slane %v774, %v778
    %781 = vmatprep.subr.mxu0 0.0
    %782 = vmatpush1.msra.mxu0 %v758
    %783 = vmatprep.subr.mxu0 0.0
    %784 = vmatpush1.msra.mxu0 %v759
    %785 = vmatprep.subr.mxu0 0.0
    %786 = vmatpush1.msra.mxu0 %v760
    %787 = vmatprep.subr.mxu0 0.0
    %788 = vmatpush1.msra.mxu0 %v761
    %789 = vmatprep.subr.mxu0 0.0
    %790 = vmatpush1.msra.mxu0 %v762
    %791 = vmatprep.subr.mxu0 0.0
    %792 = vmatpush1.msra.mxu0 %v763
    %793 = vmatprep.subr.mxu0 0.0
    %794 = vmatpush1.msra.mxu0 %v764
    %795 = vmatprep.subr.mxu0 0.0
    %796 = vmatpush1.msra.mxu0 %v765
    %797 = vmatprep.subr.mxu0 0.0
    %798 = vmatpush1.msra.mxu0 %v766
    %799 = vmatprep.subr.mxu0 0.0
    %800 = vmatpush1.msra.mxu0 %v767
    %801 = vmatprep.subr.mxu0 0.0
    %802 = vmatpush1.msra.mxu0 %v768
    %803 = vmatprep.subr.mxu0 0.0
    %804 = vmatpush1.msra.mxu0 %v769
    %805 = vmatprep.subr.mxu0 0.0
    %806 = vmatpush1.msra.mxu0 %v770
    %807 = vmatprep.subr.mxu0 0.0
    %808 = vmatpush1.msra.mxu0 %v771
    %809 = vmatprep.subr.mxu0 0.0
    %810 = vmatpush1.msra.mxu0 %v772
    %811 = vmatprep.subr.mxu0 0.0
    %812 = vmatpush1.msra.mxu0 %v773
    %813 = vmatprep.subr.mxu0 0.0
    %814 = vmatpush1.msra.mxu0 0.0
    %815 = vmatprep.subr.mxu0 0.0
    %816 = vmatpush1.msra.mxu0 0.0
    %817 = vmatprep.subr.mxu0 0.0
    %818 = vmatpush1.msra.mxu0 0.0
    %819 = vmatprep.subr.mxu0 0.0
    %820 = vmatpush1.msra.mxu0 0.0
    %821 = vmatprep.subr.mxu0 0.0
    %822 = vmatpush1.msra.mxu0 0.0
    %823 = vmatprep.subr.mxu0 0.0
    %824 = vmatpush1.msra.mxu0 0.0
    %825 = vmatprep.subr.mxu0 0.0
    %826 = vmatpush1.msra.mxu0 0.0
    %827 = vmatprep.subr.mxu0 0.0
    %828 = vmatpush1.msra.mxu0 0.0
    %829 = vmatprep.subr.mxu0 0.0
    %830 = vmatpush1.msra.mxu0 0.0
    %831 = vmatprep.subr.mxu0 0.0
    %832 = vmatpush1.msra.mxu0 0.0
    %833 = vmatprep.subr.mxu0 0.0
    %834 = vmatpush1.msra.mxu0 0.0
    %835 = vmatprep.subr.mxu0 0.0
    %836 = vmatpush1.msra.mxu0 0.0
    %837 = vmatprep.subr.mxu0 0.0
    %838 = vmatpush1.msra.mxu0 0.0
    %839 = vmatprep.subr.mxu0 0.0
    %840 = vmatpush1.msra.mxu0 0.0
    %841 = vmatprep.subr.mxu0 0.0
    %842 = vmatpush1.msra.mxu0 0.0
    %843 = vmatprep.subr.mxu0 0.0
    %844 = vmatpush1.msra.mxu0 0.0
    %845 = vmatprep.mubr.f32.mxu0 0.0
    %846 = vmatmul.mubr.f32.gmra.mrb[0].mxu0 %v757
    %v847 = vpop.f32.mrb[0].mxu0
    %v848 = vadd.f32 %v779, %v847
    %v849 = vpop.f32.mrb[0].mxu0
    %850 = vdwg.mxu0
    %v851 = vxor.u32 %v848, 2147483648
    %v852 = vmul.f32 %v851, 1.442695
    %v853 = vpow.pop %v852
    %v854 = vadd.f32 %v853, 1.0
    %v855 = vrcp.pop %v854
    %v856 = vmul.f32 1.0, %v855
    %857 = vst [vmem:[#allocation19] sm:$0xff] %v856
    // Predicated region
    $region82: #{tpu_custom_call.1} parent=1 // pred_check
      _
    $region83: #{tpu_custom_call.1} parent=1 // pred_check_branch
      %859 = sbr.rel (0) target = $region85
    $region84: #{tpu_custom_call.1} parent=1 // pred_region
      %s861 = ssub.s32 128, 128
      %862 = vsyncadd [#allocation4], %s861
      %s864 = sshll.u32 [#allocation19], 4
      %s865 = int_to_ptr.vmem [resolvable:$true] %s864
      %867 = dma.vmem_to_hbm [thread:$0]  %s865, 128, %s10, [#allocation4]
    $region85: #{tpu_custom_call.1} parent=1 // pred_fallthru
      _
    // Predicated region
    $region86: #{tpu_custom_call.1} parent=1 // pred_check
      _
    $region87: #{tpu_custom_call.1} parent=1 // pred_check_branch
      %869 = sbr.rel (0) target = $region89
    $region88: #{tpu_custom_call.1} parent=1 // pred_region
      %870 = dma.done [#allocation4], 128
    $region89: #{tpu_custom_call.1} parent=1 // pred_fallthru
      _
    %871 = vsyncpa [#allocation3], 1
    %872 = vsyncpa [#allocation6], 1
    %873 = vsyncpa [#allocation9], 1
    %874 = vsyncpa [#allocation12], 1
    %875 = vsyncpa [#allocation15], 1
    %876 = vsyncpa [#allocation18], 1
    %877 = vsyncpa [#allocation4], 1

</llo_original>
